<compile_context>
chip_gen: v6e
topology: v6e:2x2x1
jax: 0.10.0
libtpu: 0.0.40
codegen_flags: <defaults>
</compile_context>

<pallas_src>
import functools

import numpy as np
import jax
import jax.numpy as jnp
from jax.experimental import pallas as pl
from jax.experimental.pallas import tpu as pltpu

# ----- model dimensions (from the PyTorch module globals) -----
X_DIM, Y_DIM, R_DIM, Z_DIM, H_DIM = 6, 1, 5, 1, 128

KPAD = 16  # padded K (input-feature) width for the tiny entry matmuls


def _align(n, a):
    return ((n + a - 1) // a) * a


def _softplus(x):
    # numerically-stable softplus; identical formula in kernel & reference
    return jnp.maximum(x, 0.0) + jnp.log1p(jnp.exp(-jnp.abs(x)))


# --------------------------------------------------------------------------
# Static layout of the packed bf16 weight slab (W_ROWS x 256 lanes).
# All kernel slices start at row offsets that are multiples of 16 and at
# lane offsets 0 / 128 (full lane-tile slices).
# --------------------------------------------------------------------------
W_A = 0      # rows 0:7   : wd1 @ cols 0:128, wl @ cols 128:133   (entry fusion)
W_B = 16     # rows 0:6   : wc1x @ cols 0:128, wc1[z|r] @ cols 128:256
W_C = 32     # 128 rows   : wd2 @ cols 0:128, wc2 @ cols 128:256
W_D = 160    # 128 rows   : wc3 @ cols 0:128, wd3 @ cols 128:133 (rest zero)
W_E = 288    # 128 rows   : [wcm|wcs] @ cols 0:2 (rest zero) -> 128-wide head
W_ROWS = 416

# f32 aux slab: biases + tiny latent-head weights, one 8-aligned row each.
AUX_ENTRIES = ("bd1", "bd2", "bd3", "bc1", "bc2", "bc3", "bch",
               "bl", "wmuT", "wsgT", "bmu", "bsg")
AUX_ROW = {name: 8 * i for i, name in enumerate(AUX_ENTRIES)}
AUX_ROWS = 8 * len(AUX_ENTRIES)


# --------------------------------------------------------------------------
# Pallas kernel: full NeuralProcess forward (latent enc + det enc + decoder)
# --------------------------------------------------------------------------
def np_forward_kernel(data_ref, w_ref, aux_ref, out_ref, *, B, Nc, Ncp, Nt):
    dot = functools.partial(jnp.dot, preferred_element_type=jnp.float32)
    f32, bf16 = jnp.float32, jnp.bfloat16

    def aux(name, ncols):
        r = AUX_ROW[name]
        return aux_ref[r:r + 1, 0:ncols]

    BNc, BNt = B * Ncp, B * Nt
    DA = _align(BNc, 8)                    # xt rows start
    DB = DA + _align(BNt, 8)               # eps rows start
    R0 = _align(BNt, 8)                    # ctx rows start in output slab

    # ---------- context entry: fused latent + deterministic first layers ----
    xcyc = data_ref[0:BNc, 0:KPAD]                              # (BNc,16), cols 7:16 = 0
    fused = dot(xcyc.astype(bf16), w_ref[W_A:W_A + KPAD, :])    # (BNc,256) f32
    h1 = jax.nn.relu(fused[:, 0:H_DIM] + aux("bd1", H_DIM))     # det-enc layer 1
    hl = jax.nn.relu(fused[:, H_DIM:H_DIM + R_DIM] + aux("bl", R_DIM))  # latent layer

    # masked per-batch mean over the (padded) context points — valid for any Nc
    mask = (jax.lax.broadcasted_iota(jnp.int32, (1, Ncp, 1), 1) < Nc).astype(f32)
    inv_nc = 1.0 / Nc
    hmean = jnp.sum(hl.reshape(B, Ncp, R_DIM) * mask, axis=1) * inv_nc      # (B,R)

    # latent mu/sigma heads on the VPU (5 -> 1 dots; too small for the MXU)
    mu_c = jax.nn.relu(
        jnp.sum(hmean * aux("wmuT", R_DIM), axis=-1, keepdims=True) + aux("bmu", 1))
    sig_c = 0.1 + 0.9 * jax.nn.sigmoid(
        jnp.sum(hmean * aux("wsgT", R_DIM), axis=-1, keepdims=True) + aux("bsg", 1))
    eps = data_ref[DB:DB + B, 0:Z_DIM]
    z = mu_c + sig_c * eps                                                  # rsample

    # ---------- deterministic encoder layers 2 / 3 ---------------------------
    h2 = jax.nn.relu(dot(h1.astype(bf16), w_ref[W_C:W_D, 0:H_DIM]) + aux("bd2", H_DIM))
    h3 = dot(h2.astype(bf16), w_ref[W_D:W_E, H_DIM:2 * H_DIM])[:, 0:R_DIM] \
        + aux("bd3", R_DIM)
    r = jnp.sum(h3.reshape(B, Ncp, R_DIM) * mask, axis=1) * inv_nc          # (B,R)

    # ---------- decoder -------------------------------------------------------
    zr = jnp.concatenate(
        [z, r, jnp.zeros((B, KPAD - Z_DIM - R_DIM), f32)], axis=1)           # (B,16)
    zr_h = dot(zr.astype(bf16), w_ref[W_B:W_B + KPAD, H_DIM:2 * H_DIM])      # (B,H)
    zr_b = jnp.broadcast_to(zr_h.reshape(B, 1, H_DIM),
                            (B, Nt, H_DIM)).reshape(BNt, H_DIM)

    xt = data_ref[DA:DA + BNt, 0:KPAD]                                       # cols 6:16 = 0
    g1 = jax.nn.relu(dot(xt.astype(bf16), w_ref[W_B:W_B + KPAD, 0:H_DIM])
                     + zr_b + aux("bc1", H_DIM))
    g2 = jax.nn.relu(dot(g1.astype(bf16), w_ref[W_C:W_D, H_DIM:2 * H_DIM])
                     + aux("bc2", H_DIM))
    g3 = jax.nn.relu(dot(g2.astype(bf16), w_ref[W_D:W_E, 0:H_DIM])
                     + aux("bc3", H_DIM))

    # 128-wide head (real data in cols 0:2) -> lane-dense unmasked store
    head = dot(g3.astype(bf16), w_ref[W_E:W_E + H_DIM, 0:H_DIM]) + aux("bch", H_DIM)
    col = jax.lax.broadcasted_iota(jnp.int32, head.shape, 1)
    mu_branch = jnp.clip(head, -5.0, 5.0)                 # activation() clamp
    sig_branch = 0.1 + 0.9 * _softplus(head)
    out_ref[0:BNt, :] = jnp.where(col < Y_DIM, mu_branch, sig_branch)

    ctx = jnp.concatenate(
        [r, mu_c, sig_c, jnp.zeros((B, H_DIM - R_DIM - 2 * Z_DIM), f32)], axis=1)
    out_ref[R0:R0 + B, :] = ctx                            # [r | mu_c | sig_c | 0...]


# --------------------------------------------------------------------------
# Parameter / input packing (wrapper side; in production done once at load)
# --------------------------------------------------------------------------
def pack_weights(p):
    w = jnp.zeros((W_ROWS, 2 * H_DIM), jnp.float32)
    w = w.at[W_A:W_A + X_DIM + Y_DIM, 0:H_DIM].set(p["wd1"])
    w = w.at[W_A:W_A + X_DIM + Y_DIM, H_DIM:H_DIM + R_DIM].set(p["wl"])
    w = w.at[W_B:W_B + X_DIM, 0:H_DIM].set(p["wc1"][:X_DIM])
    w = w.at[W_B:W_B + Z_DIM + R_DIM, H_DIM:2 * H_DIM].set(p["wc1"][X_DIM:])
    w = w.at[W_C:W_D, 0:H_DIM].set(p["wd2"])
    w = w.at[W_C:W_D, H_DIM:2 * H_DIM].set(p["wc2"])
    w = w.at[W_D:W_E, 0:H_DIM].set(p["wc3"])
    w = w.at[W_D:W_E, H_DIM:H_DIM + R_DIM].set(p["wd3"])
    w = w.at[W_E:W_E + H_DIM, 0:Y_DIM].set(p["wcm"])
    w = w.at[W_E:W_E + H_DIM, Y_DIM:2 * Y_DIM].set(p["wcs"])
    return w.astype(jnp.bfloat16)


def pack_aux(p):
    a = jnp.zeros((AUX_ROWS, H_DIM), jnp.float32)
    pieces = {
        "bd1": p["bd1"], "bd2": p["bd2"], "bd3": p["bd3"],
        "bc1": p["bc1"], "bc2": p["bc2"], "bc3": p["bc3"],
        "bch": jnp.concatenate([p["bcm"], p["bcs"]], axis=1),
        "bl": p["bl"],
        "wmuT": p["wmu"].T, "wsgT": p["wsg"].T,
        "bmu": p["bmu"], "bsg": p["bsg"],
    }
    for name, val in pieces.items():
        r = AUX_ROW[name]
        a = a.at[r:r + 1, 0:val.shape[1]].set(val.astype(jnp.float32))
    return a


def pack_data(x_context, y_context, x_target, eps, Ncp):
    B, Nc, _ = x_context.shape
    _, Nt, _ = x_target.shape
    BNc, BNt = B * Ncp, B * Nt
    DA = _align(BNc, 8)
    DB = DA + _align(BNt, 8)
    rows = DB + _align(B, 8)
    data = jnp.zeros((rows, H_DIM), jnp.float32)
    xcyc = jnp.concatenate([x_context, y_context], axis=-1).astype(jnp.float32)
    xcyc = jnp.pad(xcyc, ((0, 0), (0, Ncp - Nc), (0, 0)))        # pad context points
    data = data.at[0:BNc, 0:X_DIM + Y_DIM].set(xcyc.reshape(BNc, X_DIM + Y_DIM))
    data = data.at[DA:DA + BNt, 0:X_DIM].set(
        x_target.reshape(BNt, X_DIM).astype(jnp.float32))
    data = data.at[DB:DB + B, 0:Z_DIM].set(eps.astype(jnp.float32))
    return data


def neural_process_forward(params, x_context, y_context, x_target, eps):
    """Eval-mode NeuralProcess.forward.

    Returns (y_pred_mu, y_pred_sigma, r, mu_context, sigma_context);
    the torch.distributions.Normal wrappers are just (mu, sigma) pairs.
    """
    B, Nc, _ = x_context.shape
    _, Nt, _ = x_target.shape
    Ncp = _align(Nc, 8)
    BNt = B * Nt
    R0 = _align(BNt, 8)

    data = pack_data(x_context, y_context, x_target, eps, Ncp)
    wslab = pack_weights(params)
    aux = pack_aux(params)

    kernel = functools.partial(np_forward_kernel, B=B, Nc=Nc, Ncp=Ncp, Nt=Nt)
    vmem = pl.BlockSpec(memory_space=pltpu.MemorySpace.VMEM)

    out = pl.pallas_call(
        kernel,
        out_shape=jax.ShapeDtypeStruct((R0 + 8, H_DIM), jnp.float32),
        in_specs=[vmem, vmem, vmem],
        out_specs=vmem,
    )(data, wslab, aux)

    ymu = out[0:BNt, 0:Y_DIM].reshape(B, Nt, Y_DIM)
    ysig = out[0:BNt, Y_DIM:2 * Y_DIM].reshape(B, Nt, Y_DIM)
    r = out[R0:R0 + B, 0:R_DIM]
    mu_c = out[R0:R0 + B, R_DIM:R_DIM + Z_DIM]
    sig_c = out[R0:R0 + B, R_DIM + Z_DIM:R_DIM + 2 * Z_DIM]
    return ymu, ysig, r, mu_c, sig_c


# --------------------------------------------------------------------------
# Deterministic parameter init (same shapes as the nn.Module __init__)
# --------------------------------------------------------------------------
def init_params(key):
    def linear(k, fan_in, fan_out):
        k1, k2 = jax.random.split(k)
        bound = 1.0 / np.sqrt(fan_in)
        w = jax.random.uniform(k1, (fan_in, fan_out), jnp.float32, -bound, bound)
        b = jax.random.uniform(k2, (1, fan_out), jnp.float32, -bound, bound)
        return w, b

    keys = jax.random.split(key, 11)
    p = {}
    p["wl"], p["bl"] = linear(keys[0], X_DIM + Y_DIM, R_DIM)            # LatentEncoder
    p["wmu"], p["bmu"] = linear(keys[1], R_DIM, Z_DIM)
    p["wsg"], p["bsg"] = linear(keys[2], R_DIM, Z_DIM)
    p["wd1"], p["bd1"] = linear(keys[3], X_DIM + Y_DIM, H_DIM)          # DeterministicEncoder
    p["wd2"], p["bd2"] = linear(keys[4], H_DIM, H_DIM)
    p["wd3"], p["bd3"] = linear(keys[5], H_DIM, R_DIM)
    p["wc1"], p["bc1"] = linear(keys[6], X_DIM + Z_DIM + R_DIM, H_DIM)  # Decoder
    p["wc2"], p["bc2"] = linear(keys[7], H_DIM, H_DIM)
    p["wc3"], p["bc3"] = linear(keys[8], H_DIM, H_DIM)
    p["wcm"], p["bcm"] = linear(keys[9], H_DIM, Y_DIM)
    p["wcs"], p["bcs"] = linear(keys[10], H_DIM, Y_DIM)
    return p


# --------------------------------------------------------------------------
# Pure-JAX (f32) reference for correctness checking
# --------------------------------------------------------------------------
def reference_forward(p, x_context, y_context, x_target, eps):
    B, Nc, _ = x_context.shape
    _, Nt, _ = x_target.shape
    xc = x_context.reshape(B * Nc, X_DIM)
    yc = y_context.reshape(B * Nc, Y_DIM)
    xt = x_target.reshape(B * Nt, X_DIM)
    xcyc = jnp.concatenate([xc, yc], axis=1)

    hl = jax.nn.relu(xcyc @ p["wl"] + p["bl"])
    hmean = hl.reshape(B, Nc, R_DIM).mean(axis=1)
    mu_c = jax.nn.relu(hmean @ p["wmu"] + p["bmu"])
    sig_c = 0.1 + 0.9 * jax.nn.sigmoid(hmean @ p["wsg"] + p["bsg"])
    z = mu_c + sig_c * eps

    h1 = jax.nn.relu(xcyc @ p["wd1"] + p["bd1"])
    h2 = jax.nn.relu(h1 @ p["wd2"] + p["bd2"])
    h3 = h2 @ p["wd3"] + p["bd3"]
    r = h3.reshape(B, Nc, R_DIM).mean(axis=1)

    zrep = jnp.repeat(z, Nt, axis=0)
    rrep = jnp.repeat(r, Nt, axis=0)
    inp = jnp.concatenate([xt, zrep, rrep], axis=1)
    g1 = jax.nn.relu(inp @ p["wc1"] + p["bc1"])
    g2 = jax.nn.relu(g1 @ p["wc2"] + p["bc2"])
    g3 = jax.nn.relu(g2 @ p["wc3"] + p["bc3"])
    mu_y = jnp.clip(g3 @ p["wcm"] + p["bcm"], -5.0, 5.0)
    sig_y = 0.1 + 0.9 * _softplus(g3 @ p["wcs"] + p["bcs"])
    return (mu_y.reshape(B, Nt, Y_DIM), sig_y.reshape(B, Nt, Y_DIM), r, mu_c, sig_c)


if __name__ == "__main__":
    key = jax.random.PRNGKey(0)
    k_params, k_xc, k_yc, k_xt, k_eps = jax.random.split(key, 5)

    B, NUM_CONTEXT, NUM_TARGET = 2, 8, 16
    params = init_params(k_params)

    x_context = jax.random.normal(k_xc, (B, NUM_CONTEXT, X_DIM), jnp.float32)
    y_context = jax.random.normal(k_yc, (B, NUM_CONTEXT, Y_DIM), jnp.float32)
    x_target = jax.random.normal(k_xt, (B, NUM_TARGET, X_DIM), jnp.float32)
    # rsample noise (eps) is drawn outside the kernel for determinism
    eps = jax.random.normal(k_eps, (B, Z_DIM), jnp.float32)

    outs = jax.jit(neural_process_forward)(params, x_context, y_context, x_target, eps)
    outs = jax.block_until_ready(outs)

    refs = reference_forward(params, x_context, y_context, x_target, eps)
    # bf16 MXU operands (f32 accumulation / f32 biases) stay well inside 1e-2.
    for got, want in zip(outs, refs):
        np.testing.assert_allclose(np.asarray(got), np.asarray(want), rtol=1e-2, atol=1e-2)

    print("KERNEL_OK")
</pallas_src>

<mosaic_0001>
module attributes {stable_mosaic.version = 11 : i64} {
  func.func @np_forward_kernel(%arg0: memref<56x128xf32, #tpu.memory_space<vmem>>, %arg1: memref<416x256xbf16, #tpu.memory_space<vmem>>, %arg2: memref<96x128xf32, #tpu.memory_space<vmem>>, %arg3: memref<40x128xf32, #tpu.memory_space<vmem>>) attributes {dimension_semantics = [], scalar_prefetch = 0 : i64, scratch_operands = 0 : i64, tpu.core_type = #tpu.core_type<tc>} {
    %c0 = arith.constant 0 : index
    %c0_0 = arith.constant 0 : index
    %0 = vector.load %arg0[%c0, %c0_0] : memref<56x128xf32, #tpu.memory_space<vmem>>, vector<16x16xf32>
    %1 = arith.truncf %0 : vector<16x16xf32> to vector<16x16xbf16>
    %c0_1 = arith.constant 0 : index
    %c0_2 = arith.constant 0 : index
    %2 = vector.load %arg1[%c0_1, %c0_2] : memref<416x256xbf16, #tpu.memory_space<vmem>>, vector<16x256xbf16>
    %cst = arith.constant dense<0.000000e+00> : vector<16x256xf32>
    %3 = tpu.matmul %1, %2, %cst {dimension_numbers = #tpu.dot_dimension_numbers<[1], [0], [0], [1], [0, 0, 1, 1], [], []>} : vector<16x16xbf16>, vector<16x256xbf16>, vector<16x256xf32> -> vector<16x256xf32>
    %4 = vector.extract_strided_slice %3 {offsets = [0, 0], sizes = [16, 128], strides = [1, 1]} : vector<16x256xf32> to vector<16x128xf32>
    %c0_3 = arith.constant 0 : index
    %c0_4 = arith.constant 0 : index
    %5 = vector.load %arg2[%c0_3, %c0_4] : memref<96x128xf32, #tpu.memory_space<vmem>>, vector<1x128xf32>
    %6 = vector.broadcast %5 : vector<1x128xf32> to vector<16x128xf32>
    %7 = arith.addf %4, %6 : vector<16x128xf32>
    %cst_5 = arith.constant 0.000000e+00 : f32
    %8 = vector.broadcast %cst_5 : f32 to vector<16x128xf32>
    %9 = arith.maximumf %7, %8 : vector<16x128xf32>
    %10 = vector.extract_strided_slice %3 {offsets = [0, 128], sizes = [16, 5], strides = [1, 1]} : vector<16x256xf32> to vector<16x5xf32>
    %c56 = arith.constant 56 : index
    %c0_6 = arith.constant 0 : index
    %11 = vector.load %arg2[%c56, %c0_6] : memref<96x128xf32, #tpu.memory_space<vmem>>, vector<1x5xf32>
    %12 = vector.broadcast %11 : vector<1x5xf32> to vector<16x5xf32>
    %13 = arith.addf %10, %12 : vector<16x5xf32>
    %cst_7 = arith.constant 0.000000e+00 : f32
    %14 = vector.broadcast %cst_7 : f32 to vector<16x5xf32>
    %15 = arith.maximumf %13, %14 : vector<16x5xf32>
    %16 = tpu.iota {dimensions = array<i32: 1>} : vector<1x8x1xi32>
    %c8_i32 = arith.constant 8 : i32
    %17 = vector.broadcast %c8_i32 : i32 to vector<1x8x1xi32>
    %18 = arith.cmpi slt, %16, %17 : vector<1x8x1xi32>
    %19 = arith.extui %18 : vector<1x8x1xi1> to vector<1x8x1xi32>
    %20 = arith.sitofp %19 : vector<1x8x1xi32> to vector<1x8x1xf32>
    %21 = vector.shape_cast %15 : vector<16x5xf32> to vector<2x8x5xf32>
    %22 = vector.broadcast %20 : vector<1x8x1xf32> to vector<2x8x5xf32>
    %23 = arith.mulf %21, %22 : vector<2x8x5xf32>
    %cst_8 = arith.constant dense<0.000000e+00> : vector<2x5xf32>
    %24 = vector.multi_reduction <add>, %23, %cst_8 [1] : vector<2x8x5xf32> to vector<2x5xf32>
    %cst_9 = arith.constant 1.250000e-01 : f32
    %25 = vector.broadcast %cst_9 : f32 to vector<2x5xf32>
    %26 = arith.mulf %24, %25 : vector<2x5xf32>
    %c64 = arith.constant 64 : index
    %c0_10 = arith.constant 0 : index
    %27 = vector.load %arg2[%c64, %c0_10] : memref<96x128xf32, #tpu.memory_space<vmem>>, vector<1x5xf32>
    %28 = vector.broadcast %27 : vector<1x5xf32> to vector<2x5xf32>
    %29 = arith.mulf %26, %28 : vector<2x5xf32>
    %cst_11 = arith.constant dense<0.000000e+00> : vector<2xf32>
    %30 = vector.multi_reduction <add>, %29, %cst_11 [1] : vector<2x5xf32> to vector<2xf32>
    %31 = vector.shape_cast %30 : vector<2xf32> to vector<2x1xf32>
    %c80 = arith.constant 80 : index
    %c0_12 = arith.constant 0 : index
    %32 = vector.load %arg2[%c80, %c0_12] : memref<96x128xf32, #tpu.memory_space<vmem>>, vector<1x1xf32>
    %33 = vector.broadcast %32 : vector<1x1xf32> to vector<2x1xf32>
    %34 = arith.addf %31, %33 : vector<2x1xf32>
    %cst_13 = arith.constant 0.000000e+00 : f32
    %35 = vector.broadcast %cst_13 : f32 to vector<2x1xf32>
    %36 = arith.maximumf %34, %35 : vector<2x1xf32>
    %c72 = arith.constant 72 : index
    %c0_14 = arith.constant 0 : index
    %37 = vector.load %arg2[%c72, %c0_14] : memref<96x128xf32, #tpu.memory_space<vmem>>, vector<1x5xf32>
    %38 = vector.broadcast %37 : vector<1x5xf32> to vector<2x5xf32>
    %39 = arith.mulf %26, %38 : vector<2x5xf32>
    %cst_15 = arith.constant dense<0.000000e+00> : vector<2xf32>
    %40 = vector.multi_reduction <add>, %39, %cst_15 [1] : vector<2x5xf32> to vector<2xf32>
    %41 = vector.shape_cast %40 : vector<2xf32> to vector<2x1xf32>
    %c88 = arith.constant 88 : index
    %c0_16 = arith.constant 0 : index
    %42 = vector.load %arg2[%c88, %c0_16] : memref<96x128xf32, #tpu.memory_space<vmem>>, vector<1x1xf32>
    %43 = vector.broadcast %42 : vector<1x1xf32> to vector<2x1xf32>
    %44 = arith.addf %41, %43 : vector<2x1xf32>
    %45 = arith.negf %44 : vector<2x1xf32>
    %46 = math.exp %45 : vector<2x1xf32>
    %cst_17 = arith.constant 1.000000e+00 : f32
    %47 = vector.broadcast %cst_17 : f32 to vector<2x1xf32>
    %48 = arith.addf %47, %46 : vector<2x1xf32>
    %49 = arith.divf %47, %48 : vector<2x1xf32>
    %cst_18 = arith.constant 0.899999976 : f32
    %50 = vector.broadcast %cst_18 : f32 to vector<2x1xf32>
    %51 = arith.mulf %50, %49 : vector<2x1xf32>
    %cst_19 = arith.constant 1.000000e-01 : f32
    %52 = vector.broadcast %cst_19 : f32 to vector<2x1xf32>
    %53 = arith.addf %52, %51 : vector<2x1xf32>
    %c48 = arith.constant 48 : index
    %c0_20 = arith.constant 0 : index
    %54 = vector.load %arg0[%c48, %c0_20] : memref<56x128xf32, #tpu.memory_space<vmem>>, vector<2x1xf32>
    %55 = arith.mulf %53, %54 : vector<2x1xf32>
    %56 = arith.addf %36, %55 : vector<2x1xf32>
    %57 = arith.truncf %9 : vector<16x128xf32> to vector<16x128xbf16>
    %c32 = arith.constant 32 : index
    %c0_21 = arith.constant 0 : index
    %58 = vector.load %arg1[%c32, %c0_21] : memref<416x256xbf16, #tpu.memory_space<vmem>>, vector<128x128xbf16>
    %cst_22 = arith.constant dense<0.000000e+00> : vector<16x128xf32>
    %59 = tpu.matmul %57, %58, %cst_22 {dimension_numbers = #tpu.dot_dimension_numbers<[1], [0], [0], [1], [0, 0, 1, 1], [], []>} : vector<16x128xbf16>, vector<128x128xbf16>, vector<16x128xf32> -> vector<16x128xf32>
    %c8 = arith.constant 8 : index
    %c0_23 = arith.constant 0 : index
    %60 = vector.load %arg2[%c8, %c0_23] : memref<96x128xf32, #tpu.memory_space<vmem>>, vector<1x128xf32>
    %61 = vector.broadcast %60 : vector<1x128xf32> to vector<16x128xf32>
    %62 = arith.addf %59, %61 : vector<16x128xf32>
    %cst_24 = arith.constant 0.000000e+00 : f32
    %63 = vector.broadcast %cst_24 : f32 to vector<16x128xf32>
    %64 = arith.maximumf %62, %63 : vector<16x128xf32>
    %65 = arith.truncf %64 : vector<16x128xf32> to vector<16x128xbf16>
    %c160 = arith.constant 160 : index
    %c128 = arith.constant 128 : index
    %66 = vector.load %arg1[%c160, %c128] : memref<416x256xbf16, #tpu.memory_space<vmem>>, vector<128x128xbf16>
    %cst_25 = arith.constant dense<0.000000e+00> : vector<16x128xf32>
    %67 = tpu.matmul %65, %66, %cst_25 {dimension_numbers = #tpu.dot_dimension_numbers<[1], [0], [0], [1], [0, 0, 1, 1], [], []>} : vector<16x128xbf16>, vector<128x128xbf16>, vector<16x128xf32> -> vector<16x128xf32>
    %68 = vector.extract_strided_slice %67 {offsets = [0, 0], sizes = [16, 5], strides = [1, 1]} : vector<16x128xf32> to vector<16x5xf32>
    %c16 = arith.constant 16 : index
    %c0_26 = arith.constant 0 : index
    %69 = vector.load %arg2[%c16, %c0_26] : memref<96x128xf32, #tpu.memory_space<vmem>>, vector<1x5xf32>
    %70 = vector.broadcast %69 : vector<1x5xf32> to vector<16x5xf32>
    %71 = arith.addf %68, %70 : vector<16x5xf32>
    %72 = vector.shape_cast %71 : vector<16x5xf32> to vector<2x8x5xf32>
    %73 = vector.broadcast %20 : vector<1x8x1xf32> to vector<2x8x5xf32>
    %74 = arith.mulf %72, %73 : vector<2x8x5xf32>
    %cst_27 = arith.constant dense<0.000000e+00> : vector<2x5xf32>
    %75 = vector.multi_reduction <add>, %74, %cst_27 [1] : vector<2x8x5xf32> to vector<2x5xf32>
    %cst_28 = arith.constant 1.250000e-01 : f32
    %76 = vector.broadcast %cst_28 : f32 to vector<2x5xf32>
    %77 = arith.mulf %75, %76 : vector<2x5xf32>
    %cst_29 = arith.constant 0.000000e+00 : f32
    %78 = vector.broadcast %cst_29 : f32 to vector<2x10xf32>
    %79 = tpu.concatenate %56, %77, %78 in 1 : vector<2x1xf32>, vector<2x5xf32>, vector<2x10xf32> -> vector<2x16xf32>
    %80 = arith.truncf %79 : vector<2x16xf32> to vector<2x16xbf16>
    %c16_30 = arith.constant 16 : index
    %c128_31 = arith.constant 128 : index
    %81 = vector.load %arg1[%c16_30, %c128_31] : memref<416x256xbf16, #tpu.memory_space<vmem>>, vector<16x128xbf16>
    %cst_32 = arith.constant dense<0.000000e+00> : vector<2x128xf32>
    %82 = tpu.matmul %80, %81, %cst_32 {dimension_numbers = #tpu.dot_dimension_numbers<[1], [0], [0], [1], [0, 0, 1, 1], [], []>} : vector<2x16xbf16>, vector<16x128xbf16>, vector<2x128xf32> -> vector<2x128xf32>
    %83 = vector.shape_cast %82 : vector<2x128xf32> to vector<2x1x128xf32>
    %84 = vector.shape_cast %83 : vector<2x1x128xf32> to vector<2x1x128xf32>
    %85 = vector.broadcast %84 : vector<2x1x128xf32> to vector<2x16x128xf32>
    %86 = vector.shape_cast %85 : vector<2x16x128xf32> to vector<32x128xf32>
    %c16_33 = arith.constant 16 : index
    %c0_34 = arith.constant 0 : index
    %87 = vector.load %arg0[%c16_33, %c0_34] : memref<56x128xf32, #tpu.memory_space<vmem>>, vector<32x16xf32>
    %88 = arith.truncf %87 : vector<32x16xf32> to vector<32x16xbf16>
    %c16_35 = arith.constant 16 : index
    %c0_36 = arith.constant 0 : index
    %89 = vector.load %arg1[%c16_35, %c0_36] : memref<416x256xbf16, #tpu.memory_space<vmem>>, vector<16x128xbf16>
    %cst_37 = arith.constant dense<0.000000e+00> : vector<32x128xf32>
    %90 = tpu.matmul %88, %89, %cst_37 {dimension_numbers = #tpu.dot_dimension_numbers<[1], [0], [0], [1], [0, 0, 1, 1], [], []>} : vector<32x16xbf16>, vector<16x128xbf16>, vector<32x128xf32> -> vector<32x128xf32>
    %91 = arith.addf %90, %86 : vector<32x128xf32>
    %c24 = arith.constant 24 : index
    %c0_38 = arith.constant 0 : index
    %92 = vector.load %arg2[%c24, %c0_38] : memref<96x128xf32, #tpu.memory_space<vmem>>, vector<1x128xf32>
    %93 = vector.broadcast %92 : vector<1x128xf32> to vector<32x128xf32>
    %94 = arith.addf %91, %93 : vector<32x128xf32>
    %cst_39 = arith.constant 0.000000e+00 : f32
    %95 = vector.broadcast %cst_39 : f32 to vector<32x128xf32>
    %96 = arith.maximumf %94, %95 : vector<32x128xf32>
    %97 = arith.truncf %96 : vector<32x128xf32> to vector<32x128xbf16>
    %c32_40 = arith.constant 32 : index
    %c128_41 = arith.constant 128 : index
    %98 = vector.load %arg1[%c32_40, %c128_41] : memref<416x256xbf16, #tpu.memory_space<vmem>>, vector<128x128xbf16>
    %cst_42 = arith.constant dense<0.000000e+00> : vector<32x128xf32>
    %99 = tpu.matmul %97, %98, %cst_42 {dimension_numbers = #tpu.dot_dimension_numbers<[1], [0], [0], [1], [0, 0, 1, 1], [], []>} : vector<32x128xbf16>, vector<128x128xbf16>, vector<32x128xf32> -> vector<32x128xf32>
    %c32_43 = arith.constant 32 : index
    %c0_44 = arith.constant 0 : index
    %100 = vector.load %arg2[%c32_43, %c0_44] : memref<96x128xf32, #tpu.memory_space<vmem>>, vector<1x128xf32>
    %101 = vector.broadcast %100 : vector<1x128xf32> to vector<32x128xf32>
    %102 = arith.addf %99, %101 : vector<32x128xf32>
    %cst_45 = arith.constant 0.000000e+00 : f32
    %103 = vector.broadcast %cst_45 : f32 to vector<32x128xf32>
    %104 = arith.maximumf %102, %103 : vector<32x128xf32>
    %105 = arith.truncf %104 : vector<32x128xf32> to vector<32x128xbf16>
    %c160_46 = arith.constant 160 : index
    %c0_47 = arith.constant 0 : index
    %106 = vector.load %arg1[%c160_46, %c0_47] : memref<416x256xbf16, #tpu.memory_space<vmem>>, vector<128x128xbf16>
    %cst_48 = arith.constant dense<0.000000e+00> : vector<32x128xf32>
    %107 = tpu.matmul %105, %106, %cst_48 {dimension_numbers = #tpu.dot_dimension_numbers<[1], [0], [0], [1], [0, 0, 1, 1], [], []>} : vector<32x128xbf16>, vector<128x128xbf16>, vector<32x128xf32> -> vector<32x128xf32>
    %c40 = arith.constant 40 : index
    %c0_49 = arith.constant 0 : index
    %108 = vector.load %arg2[%c40, %c0_49] : memref<96x128xf32, #tpu.memory_space<vmem>>, vector<1x128xf32>
    %109 = vector.broadcast %108 : vector<1x128xf32> to vector<32x128xf32>
    %110 = arith.addf %107, %109 : vector<32x128xf32>
    %cst_50 = arith.constant 0.000000e+00 : f32
    %111 = vector.broadcast %cst_50 : f32 to vector<32x128xf32>
    %112 = arith.maximumf %110, %111 : vector<32x128xf32>
    %113 = arith.truncf %112 : vector<32x128xf32> to vector<32x128xbf16>
    %c288 = arith.constant 288 : index
    %c0_51 = arith.constant 0 : index
    %114 = vector.load %arg1[%c288, %c0_51] : memref<416x256xbf16, #tpu.memory_space<vmem>>, vector<128x128xbf16>
    %cst_52 = arith.constant dense<0.000000e+00> : vector<32x128xf32>
    %115 = tpu.matmul %113, %114, %cst_52 {dimension_numbers = #tpu.dot_dimension_numbers<[1], [0], [0], [1], [0, 0, 1, 1], [], []>} : vector<32x128xbf16>, vector<128x128xbf16>, vector<32x128xf32> -> vector<32x128xf32>
    %c48_53 = arith.constant 48 : index
    %c0_54 = arith.constant 0 : index
    %116 = vector.load %arg2[%c48_53, %c0_54] : memref<96x128xf32, #tpu.memory_space<vmem>>, vector<1x128xf32>
    %117 = vector.broadcast %116 : vector<1x128xf32> to vector<32x128xf32>
    %118 = arith.addf %115, %117 : vector<32x128xf32>
    %119 = tpu.iota {dimensions = array<i32: 1>} : vector<32x128xi32>
    %cst_55 = arith.constant -5.000000e+00 : f32
    %cst_56 = arith.constant 5.000000e+00 : f32
    %120 = vector.broadcast %cst_55 : f32 to vector<32x128xf32>
    %121 = arith.maximumf %120, %118 : vector<32x128xf32>
    %122 = vector.broadcast %cst_56 : f32 to vector<32x128xf32>
    %123 = arith.minimumf %122, %121 : vector<32x128xf32>
    %cst_57 = arith.constant 0.000000e+00 : f32
    %124 = vector.broadcast %cst_57 : f32 to vector<32x128xf32>
    %125 = arith.maximumf %118, %124 : vector<32x128xf32>
    %126 = math.absf %118 : vector<32x128xf32>
    %cst_58 = arith.constant 0.000000e+00 : f32
    %127 = vector.broadcast %cst_58 : f32 to vector<32x128xf32>
    %128 = arith.subf %127, %126 : vector<32x128xf32>
    %129 = math.exp %128 : vector<32x128xf32>
    %130 = math.log1p %129 : vector<32x128xf32>
    %131 = arith.addf %125, %130 : vector<32x128xf32>
    %cst_59 = arith.constant 0.899999976 : f32
    %132 = vector.broadcast %cst_59 : f32 to vector<32x128xf32>
    %133 = arith.mulf %132, %131 : vector<32x128xf32>
    %cst_60 = arith.constant 1.000000e-01 : f32
    %134 = vector.broadcast %cst_60 : f32 to vector<32x128xf32>
    %135 = arith.addf %134, %133 : vector<32x128xf32>
    %c1_i32 = arith.constant 1 : i32
    %136 = vector.broadcast %c1_i32 : i32 to vector<32x128xi32>
    %137 = arith.cmpi slt, %119, %136 : vector<32x128xi32>
    %138 = arith.select %137, %123, %135 : vector<32x128xi1>, vector<32x128xf32>
    %c0_61 = arith.constant 0 : index
    %c0_62 = arith.constant 0 : index
    %139 = vector.load %arg3[%c0_61, %c0_62] : memref<40x128xf32, #tpu.memory_space<vmem>>, vector<32x128xf32>
    tpu.vector_store %arg3[%c0_61, %c0_62], %138 {strides = array<i32>} : memref<40x128xf32, #tpu.memory_space<vmem>>, vector<32x128xf32>,
    %cst_63 = arith.constant 0.000000e+00 : f32
    %140 = vector.broadcast %cst_63 : f32 to vector<2x121xf32>
    %141 = tpu.concatenate %77, %36, %53, %140 in 1 : vector<2x5xf32>, vector<2x1xf32>, vector<2x1xf32>, vector<2x121xf32> -> vector<2x128xf32>
    %c32_64 = arith.constant 32 : index
    %c0_65 = arith.constant 0 : index
    %142 = vector.load %arg3[%c32_64, %c0_65] : memref<40x128xf32, #tpu.memory_space<vmem>>, vector<2x128xf32>
    tpu.vector_store %arg3[%c32_64, %c0_65], %141 {strides = array<i32>} : memref<40x128xf32, #tpu.memory_space<vmem>>, vector<2x128xf32>,
    return
  }
}

</mosaic_0001>

<llo_original>
// kernel: neural_process_forward.1
$region0: #{neural_process_forward.1}
  #allocation0 [shape = 'u32[]', space=smem, size = 0x4, offset = 0x4, fixed_abs, tag = 'smem constant byte address 0x4 - core index']
  #allocation1 [shape = 'u32[144,128]{1,0:T(1,128)}', space=vmem, size = 0x12000, scoped, tag = 'internal scratch']
  %s0 = inlined_call_operand.vmem [shape: f32[56,128], index: 0, kind: input, shape index: {}]
  %s1 = inlined_call_operand.vmem [shape: bf16[416,256], index: 1, kind: input, shape index: {}]
  %s2 = inlined_call_operand.vmem [shape: f32[96,128], index: 2, kind: input, shape index: {}]
  %s3 = inlined_call_operand.vmem [shape: f32[40,128], index: 3, kind: output, shape index: {}]
  %s4 = sld [smem:[#allocation0]]
  $region22: #{neural_process_forward.1} parent=0
    _
  %s6 = ssub.s32 1, %s4
  %s7 = scalar_select 0, %s6, %s4
  // Predicated region
  $region2: #{neural_process_forward.1} parent=0 // pred_check
    _
  $region3: #{neural_process_forward.1} parent=0 // pred_check_branch
    %9 = sbr.rel (0) target = $region5
  $region4: #{neural_process_forward.1} parent=0 // pred_region
    _
  $region5: #{neural_process_forward.1} parent=0 // pred_fallthru
    _
  // Predicated region
  $region6: #{neural_process_forward.1} parent=0 // pred_check
    _
  $region7: #{neural_process_forward.1} parent=0 // pred_check_branch
    %11 = sbr.rel (0) target = $region9
  $region8: #{neural_process_forward.1} parent=0 // pred_region
    _
  $region9: #{neural_process_forward.1} parent=0 // pred_fallthru
    _
  // Predicated region
  $region10: #{neural_process_forward.1} parent=0 // pred_check
    _
  $region11: #{neural_process_forward.1} parent=0 // pred_check_branch
    %13 = sbr.rel (0) target = $region13
  $region12: #{neural_process_forward.1} parent=0 // pred_region
    _
  $region13: #{neural_process_forward.1} parent=0 // pred_fallthru
    _
  %v15 = vld [vmem:[%s0] sm:$0xff]
  %v16 = vld [vmem:[%s0 + $0x8] sm:$0xff]
  %v17 = vpack.c.bf16 %v16, %v15
  %v18 = vld [vmem:[%s1] sm:$0xff]
  %v19 = vld [vmem:[%s1 + $0x8] sm:$0xff]
  %v22 = vunpack.c.l.b16 %v18
  %v23 = vunpack.c.h.b16 %v18
  %v24 = vunpack.c.l.b16 %v19
  %v25 = vunpack.c.h.b16 %v19
  %v26 = vpack.c.b16 %v24, %v22
  %v27 = vpack.c.b16 %v25, %v23
  %vm30 = vcmask 130048
  %v32 = vsel %vm30, %v17, 0
  %34 = vmatprep.subr.bf16.mxu0 0
  %35 = vmatpush1.bf16.msra.mxu0 0
  %36 = vmatprep.subr.bf16.mxu0 0
  %37 = vmatpush1.bf16.msra.mxu0 0
  %38 = vmatprep.subr.bf16.mxu0 0
  %39 = vmatpush1.bf16.msra.mxu0 0
  %40 = vmatprep.subr.bf16.mxu0 0
  %41 = vmatpush1.bf16.msra.mxu0 0
  %42 = vmatprep.subr.bf16.mxu0 0
  %43 = vmatpush1.bf16.msra.mxu0 0
  %44 = vmatprep.subr.bf16.mxu0 0
  %45 = vmatpush1.bf16.msra.mxu0 0
  %46 = vmatprep.subr.bf16.mxu0 0
  %47 = vmatpush1.bf16.msra.mxu0 0
  %48 = vmatprep.subr.bf16.mxu0 %v27
  %49 = vmatpush1.bf16.msra.mxu0 %v26
  %50 = vmatprep.subr.bf16.mxu0 0
  %51 = vmatpush2.bf16.msra.mxu0 0
  %52 = vmatprep.subr.bf16.mxu0 0
  %53 = vmatpush2.bf16.msra.mxu0 0
  %54 = vmatprep.subr.bf16.mxu0 0
  %55 = vmatpush2.bf16.msra.mxu0 0
  %56 = vmatprep.subr.bf16.mxu0 0
  %57 = vmatpush2.bf16.msra.mxu0 0
  %58 = vmatprep.subr.bf16.mxu0 0
  %59 = vmatpush2.bf16.msra.mxu0 0
  %60 = vmatprep.subr.bf16.mxu0 0
  %61 = vmatpush2.bf16.msra.mxu0 0
  %62 = vmatprep.subr.bf16.mxu0 0
  %63 = vmatpush2.bf16.msra.mxu0 0
  %64 = vmatprep.subr.bf16.mxu0 0
  %65 = vmatpush2.bf16.msra.mxu0 0
  %66 = vmatprep.mubr.bf16.mxu0 0
  %67 = vmatmul.mubr.bf16.gmra.mxu0 %v32
  %v68 = vpop.f32.mrf.mxu0
  %v69 = vadd.f32 0.0, %v68
  %v70 = vpop.f32.mrf.mxu0
  %v71 = vadd.f32 0.0, %v70
  %v72 = vpop.f32.mrf.mxu0
  %v73 = vadd.f32 0.0, %v72
  %v74 = vpop.f32.mrf.mxu0
  %v75 = vadd.f32 0.0, %v74
  %76 = vdwg.mxu0
  %v77 = vld [vmem:[%s2] sm:$0x1]
  %v78 = vlaneseq
  %v79 = vshrl.u32 %v78, 7
  %v80 = vsub.s32 0, %v79
  %v81 = vrot.slane %v77, %v80
  %v82 = vadd.f32 %v69, %v81
  %v83 = vadd.f32 %v73, %v81
  %v84 = vmax.f32 %v82, 0.0
  %v85 = vmax.f32 %v83, 0.0
  %v86 = vld [vmem:[%s2 + $0x38] sm:$0x1]
  %v87 = vlaneseq
  %v88 = vshrl.u32 %v87, 7
  %v89 = vsub.s32 0, %v88
  %v90 = vrot.slane %v86, %v89
  %v91 = vadd.f32 %v71, %v90
  %v92 = vadd.f32 %v75, %v90
  %v93 = vmax.f32 %v91, 0.0
  %v94 = vmax.f32 %v92, 0.0
  %v95 = vlaneseq
  %v96 = vshrl.u32 %v95, 7
  %vm97 = vcmp.lt.s32.totalorder %v96, 8
  %v98 = vsel %vm97, 1, 0
  %v99 = vcvt.s32.f32 %v98
  %v100 = vmul.f32 %v93, %v99
  %v101 = vmul.f32 %v94, %v99
  %vm102 = vcmask 39936
  %v103 = vsel %vm102, %v100, 0.0
  %v104 = vrot.slane %v103, 4
  %v105 = vadd.f32 %v103, %v104
  %v106 = vrot.slane %v105, 2
  %v107 = vadd.f32 %v105, %v106
  %v108 = vrot.slane %v107, 1
  %v109 = vadd.f32 %v107, %v108
  %v110 = vsel %vm102, %v101, 0.0
  %v111 = vrot.slane %v110, 4
  %v112 = vadd.f32 %v110, %v111
  %v113 = vrot.slane %v112, 2
  %v114 = vadd.f32 %v112, %v113
  %v115 = vrot.slane %v114, 1
  %v116 = vadd.f32 %v114, %v115
  %v117 = vmul.f32 %v109, 0.125
  %v118 = vmul.f32 %v116, 0.125
  %v119 = vld [vmem:[%s2 + $0x40] sm:$0x1]
  %v120 = vlaneseq
  %v121 = vshrl.u32 %v120, 7
  %v122 = vsub.s32 0, %v121
  %v123 = vrot.slane %v119, %v122
  %v124 = vmul.f32 %v117, %v123
  %v125 = vmul.f32 %v118, %v123
  %v128 = vrot.slane %v125, 7
  %vm129 = vcmask 1041409
  %v130 = vsel %vm129, %v128, %v124
  %vm132 = vcmask 33792
  %v133 = vsel %vm132, %v130, 0.0
  %134 = vadd.xlane.f32.xlu0 %v133
  %v135 = vpop.xlane.xlu0 %134
  %v136 = vld [vmem:[%s2 + $0x50] sm:$0x1]
  %v137 = vlaneseq
  %v138 = vshrl.u32 %v137, 7
  %v139 = vsub.s32 0, %v138
  %v140 = vrot.slane %v136, %v139
  %v141 = vadd.f32 %v135, %v140
  %v142 = vmax.f32 %v141, 0.0
  %v143 = vld [vmem:[%s2 + $0x48] sm:$0x1]
  %v144 = vlaneseq
  %v145 = vshrl.u32 %v144, 7
  %v146 = vsub.s32 0, %v145
  %v147 = vrot.slane %v143, %v146
  %v148 = vmul.f32 %v117, %v147
  %v149 = vmul.f32 %v118, %v147
  %v152 = vrot.slane %v149, 7
  %v153 = vsel %vm129, %v152, %v148
  %v155 = vsel %vm132, %v153, 0.0
  %156 = vadd.xlane.f32.xlu0 %v155
  %v157 = vpop.xlane.xlu0 %156
  %v158 = vld [vmem:[%s2 + $0x58] sm:$0x1]
  %v159 = vlaneseq
  %v160 = vshrl.u32 %v159, 7
  %v161 = vsub.s32 0, %v160
  %v162 = vrot.slane %v158, %v161
  %v163 = vadd.f32 %v157, %v162
  %v164 = vxor.u32 %v163, 2147483648
  %v165 = vmul.f32 %v164, 1.442695
  %v166 = vpow.pop %v165
  %v167 = vadd.f32 %v166, 1.0
  %v168 = vrcp.pop %v167
  %v169 = vmul.f32 1.0, %v168
  %v170 = vmul.f32 %v169, 0.9
  %v171 = vadd.f32 %v170, 0.1
  %v172 = vld [vmem:[%s0 + $0x30] sm:$0x3]
  %v173 = vmul.f32 %v171, %v172
  %v174 = vadd.f32 %v142, %v173
  %v175 = vpack.c.bf16 %v85, %v84
  %v176 = vld [vmem:[%s1 + $0x20] sm:$0xf]
  %v177 = vld [vmem:[%s1 + $0x28] sm:$0xf]
  %v178 = vld [vmem:[%s1 + $0x30] sm:$0xf]
  %v179 = vld [vmem:[%s1 + $0x38] sm:$0xf]
  %v180 = vld [vmem:[%s1 + $0x40] sm:$0xf]
  %v181 = vld [vmem:[%s1 + $0x48] sm:$0xf]
  %v182 = vld [vmem:[%s1 + $0x50] sm:$0xf]
  %v183 = vld [vmem:[%s1 + $0x58] sm:$0xf]
  %v184 = vld [vmem:[%s1 + $0x60] sm:$0xf]
  %v185 = vld [vmem:[%s1 + $0x68] sm:$0xf]
  %v186 = vld [vmem:[%s1 + $0x70] sm:$0xf]
  %v187 = vld [vmem:[%s1 + $0x78] sm:$0xf]
  %v188 = vld [vmem:[%s1 + $0x80] sm:$0xf]
  %v189 = vld [vmem:[%s1 + $0x88] sm:$0xf]
  %v190 = vld [vmem:[%s1 + $0x90] sm:$0xf]
  %v191 = vld [vmem:[%s1 + $0x98] sm:$0xf]
  %v192 = vld [vmem:[%s2 + $0x8] sm:$0x1]
  %v193 = vlaneseq
  %v194 = vshrl.u32 %v193, 7
  %v195 = vsub.s32 0, %v194
  %v196 = vrot.slane %v192, %v195
  %v213 = vunpack.c.l.b16 %v176
  %v214 = vunpack.c.l.b16 %v177
  %v215 = vunpack.c.l.b16 %v178
  %v216 = vunpack.c.l.b16 %v179
  %v217 = vunpack.c.l.b16 %v180
  %v218 = vunpack.c.l.b16 %v181
  %v219 = vunpack.c.l.b16 %v182
  %v220 = vunpack.c.l.b16 %v183
  %v221 = vunpack.c.l.b16 %v184
  %v222 = vunpack.c.l.b16 %v185
  %v223 = vunpack.c.l.b16 %v186
  %v224 = vunpack.c.l.b16 %v187
  %v225 = vunpack.c.l.b16 %v188
  %v226 = vunpack.c.l.b16 %v189
  %v227 = vunpack.c.l.b16 %v190
  %v228 = vunpack.c.l.b16 %v191
  %v229 = vpack.c.b16 %v214, %v213
  %v230 = vpack.c.b16 %v216, %v215
  %v231 = vpack.c.b16 %v218, %v217
  %v232 = vpack.c.b16 %v220, %v219
  %v233 = vpack.c.b16 %v222, %v221
  %v234 = vpack.c.b16 %v224, %v223
  %v235 = vpack.c.b16 %v226, %v225
  %v236 = vpack.c.b16 %v228, %v227
  %245 = vmatprep.subr.bf16.mxu0 0
  %246 = vmatpush1.bf16.msra.mxu0 %v236
  %247 = vmatprep.subr.bf16.mxu0 0
  %248 = vmatpush1.bf16.msra.mxu0 %v235
  %249 = vmatprep.subr.bf16.mxu0 0
  %250 = vmatpush1.bf16.msra.mxu0 %v234
  %251 = vmatprep.subr.bf16.mxu0 0
  %252 = vmatpush1.bf16.msra.mxu0 %v233
  %253 = vmatprep.subr.bf16.mxu0 0
  %254 = vmatpush1.bf16.msra.mxu0 %v232
  %255 = vmatprep.subr.bf16.mxu0 0
  %256 = vmatpush1.bf16.msra.mxu0 %v231
  %257 = vmatprep.subr.bf16.mxu0 0
  %258 = vmatpush1.bf16.msra.mxu0 %v230
  %259 = vmatprep.subr.bf16.mxu0 0
  %260 = vmatpush1.bf16.msra.mxu0 %v229
  %261 = vmatprep.subr.bf16.mxu0 0
  %262 = vmatpush2.bf16.msra.mxu0 0
  %263 = vmatprep.subr.bf16.mxu0 0
  %264 = vmatpush2.bf16.msra.mxu0 0
  %265 = vmatprep.subr.bf16.mxu0 0
  %266 = vmatpush2.bf16.msra.mxu0 0
  %267 = vmatprep.subr.bf16.mxu0 0
  %268 = vmatpush2.bf16.msra.mxu0 0
  %269 = vmatprep.subr.bf16.mxu0 0
  %270 = vmatpush2.bf16.msra.mxu0 0
  %271 = vmatprep.subr.bf16.mxu0 0
  %272 = vmatpush2.bf16.msra.mxu0 0
  %273 = vmatprep.subr.bf16.mxu0 0
  %274 = vmatpush2.bf16.msra.mxu0 0
  %275 = vmatprep.subr.bf16.mxu0 0
  %276 = vmatpush2.bf16.msra.mxu0 0
  %277 = vmatprep.mubr.bf16.mxu0 0
  %278 = vmatmul.mubr.bf16.gmra.mxu0 %v175
  %v279 = vpop.f32.mrf.mxu0
  %v280 = vadd.f32 %v196, %v279
  %v281 = vpop.f32.mrf.mxu0
  %v282 = vpop.f32.mrf.mxu0
  %v283 = vadd.f32 %v196, %v282
  %v284 = vpop.f32.mrf.mxu0
  %285 = vdwg.mxu0
  %v286 = vmax.f32 %v280, 0.0
  %v287 = vmax.f32 %v283, 0.0
  %v288 = vpack.c.bf16 %v287, %v286
  %v289 = vld [vmem:[%s1 + $0xa4] sm:$0xf]
  %v290 = vld [vmem:[%s1 + $0xac] sm:$0xf]
  %v291 = vld [vmem:[%s1 + $0xb4] sm:$0xf]
  %v292 = vld [vmem:[%s1 + $0xbc] sm:$0xf]
  %v293 = vld [vmem:[%s1 + $0xc4] sm:$0xf]
  %v294 = vld [vmem:[%s1 + $0xcc] sm:$0xf]
  %v295 = vld [vmem:[%s1 + $0xd4] sm:$0xf]
  %v296 = vld [vmem:[%s1 + $0xdc] sm:$0xf]
  %v297 = vld [vmem:[%s1 + $0xe4] sm:$0xf]
  %v298 = vld [vmem:[%s1 + $0xec] sm:$0xf]
  %v299 = vld [vmem:[%s1 + $0xf4] sm:$0xf]
  %v300 = vld [vmem:[%s1 + $0xfc] sm:$0xf]
  %v301 = vld [vmem:[%s1 + $0x104] sm:$0xf]
  %v302 = vld [vmem:[%s1 + $0x10c] sm:$0xf]
  %v303 = vld [vmem:[%s1 + $0x114] sm:$0xf]
  %v304 = vld [vmem:[%s1 + $0x11c] sm:$0xf]
  %v321 = vunpack.c.l.b16 %v289
  %v322 = vunpack.c.l.b16 %v290
  %v323 = vunpack.c.l.b16 %v291
  %v324 = vunpack.c.l.b16 %v292
  %v325 = vunpack.c.l.b16 %v293
  %v326 = vunpack.c.l.b16 %v294
  %v327 = vunpack.c.l.b16 %v295
  %v328 = vunpack.c.l.b16 %v296
  %v329 = vunpack.c.l.b16 %v297
  %v330 = vunpack.c.l.b16 %v298
  %v331 = vunpack.c.l.b16 %v299
  %v332 = vunpack.c.l.b16 %v300
  %v333 = vunpack.c.l.b16 %v301
  %v334 = vunpack.c.l.b16 %v302
  %v335 = vunpack.c.l.b16 %v303
  %v336 = vunpack.c.l.b16 %v304
  %v337 = vpack.c.b16 %v322, %v321
  %v338 = vpack.c.b16 %v324, %v323
  %v339 = vpack.c.b16 %v326, %v325
  %v340 = vpack.c.b16 %v328, %v327
  %v341 = vpack.c.b16 %v330, %v329
  %v342 = vpack.c.b16 %v332, %v331
  %v343 = vpack.c.b16 %v334, %v333
  %v344 = vpack.c.b16 %v336, %v335
  %353 = vmatprep.subr.bf16.mxu0 0
  %354 = vmatpush1.bf16.msra.mxu0 %v344
  %355 = vmatprep.subr.bf16.mxu0 0
  %356 = vmatpush1.bf16.msra.mxu0 %v343
  %357 = vmatprep.subr.bf16.mxu0 0
  %358 = vmatpush1.bf16.msra.mxu0 %v342
  %359 = vmatprep.subr.bf16.mxu0 0
  %360 = vmatpush1.bf16.msra.mxu0 %v341
  %361 = vmatprep.subr.bf16.mxu0 0
  %362 = vmatpush1.bf16.msra.mxu0 %v340
  %363 = vmatprep.subr.bf16.mxu0 0
  %364 = vmatpush1.bf16.msra.mxu0 %v339
  %365 = vmatprep.subr.bf16.mxu0 0
  %366 = vmatpush1.bf16.msra.mxu0 %v338
  %367 = vmatprep.subr.bf16.mxu0 0
  %368 = vmatpush1.bf16.msra.mxu0 %v337
  %369 = vmatprep.subr.bf16.mxu0 0
  %370 = vmatpush2.bf16.msra.mxu0 0
  %371 = vmatprep.subr.bf16.mxu0 0
  %372 = vmatpush2.bf16.msra.mxu0 0
  %373 = vmatprep.subr.bf16.mxu0 0
  %374 = vmatpush2.bf16.msra.mxu0 0
  %375 = vmatprep.subr.bf16.mxu0 0
  %376 = vmatpush2.bf16.msra.mxu0 0
  %377 = vmatprep.subr.bf16.mxu0 0
  %378 = vmatpush2.bf16.msra.mxu0 0
  %379 = vmatprep.subr.bf16.mxu0 0
  %380 = vmatpush2.bf16.msra.mxu0 0
  %381 = vmatprep.subr.bf16.mxu0 0
  %382 = vmatpush2.bf16.msra.mxu0 0
  %383 = vmatprep.subr.bf16.mxu0 0
  %384 = vmatpush2.bf16.msra.mxu0 0
  %385 = vmatprep.mubr.bf16.mxu0 0
  %386 = vmatmul.mubr.bf16.gmra.mxu0 %v288
  %v387 = vpop.f32.mrf.mxu0
  %v388 = vadd.f32 0.0, %v387
  %v389 = vpop.f32.mrf.mxu0
  %v390 = vpop.f32.mrf.mxu0
  %v391 = vadd.f32 0.0, %v390
  %v392 = vpop.f32.mrf.mxu0
  %393 = vdwg.mxu0
  %v394 = vld [vmem:[%s2 + $0x10] sm:$0x1]
  %v395 = vlaneseq
  %v396 = vshrl.u32 %v395, 7
  %v397 = vsub.s32 0, %v396
  %v398 = vrot.slane %v394, %v397
  %v399 = vadd.f32 %v388, %v398
  %v400 = vadd.f32 %v391, %v398
  %v401 = vmul.f32 %v399, %v99
  %v402 = vmul.f32 %v400, %v99
  %v403 = vsel %vm102, %v401, 0.0
  %v404 = vrot.slane %v403, 4
  %v405 = vadd.f32 %v403, %v404
  %v406 = vrot.slane %v405, 2
  %v407 = vadd.f32 %v405, %v406
  %v408 = vrot.slane %v407, 1
  %v409 = vadd.f32 %v407, %v408
  %v410 = vsel %vm102, %v402, 0.0
  %v411 = vrot.slane %v410, 4
  %v412 = vadd.f32 %v410, %v411
  %v413 = vrot.slane %v412, 2
  %v414 = vadd.f32 %v412, %v413
  %v415 = vrot.slane %v414, 1
  %v416 = vadd.f32 %v414, %v415
  %v417 = vmul.f32 %v409, 0.125
  %v418 = vmul.f32 %v416, 0.125
  %v421 = vsel %vm129, %v418, %v417
  %422 = vrot.lane.b32.xlu0 %v421, 1
  %v423 = vpop.permute.xlu0 %422
  %vm425 = vcmask 7168
  %v426 = vsel %vm425, %v174, %v423
  %vm427 = vcmask 48128
  %v428 = vsel %vm427, %v426, 0.0
  %v429 = vpack.c.bf16 %v428, %v428
  %v430 = vld [vmem:[%s1 + $0x14] sm:$0xf]
  %v431 = vld [vmem:[%s1 + $0x1c] sm:$0xf]
  %v434 = vunpack.c.l.b16 %v430
  %v435 = vunpack.c.l.b16 %v431
  %v436 = vpack.c.b16 %v435, %v434
  %v439 = vsel %vm30, %v429, 0
  %441 = vmatprep.subr.bf16.mxu0 0
  %442 = vmatpush1.bf16.msra.mxu0 0
  %443 = vmatprep.subr.bf16.mxu0 0
  %444 = vmatpush1.bf16.msra.mxu0 0
  %445 = vmatprep.subr.bf16.mxu0 0
  %446 = vmatpush1.bf16.msra.mxu0 0
  %447 = vmatprep.subr.bf16.mxu0 0
  %448 = vmatpush1.bf16.msra.mxu0 0
  %449 = vmatprep.subr.bf16.mxu0 0
  %450 = vmatpush1.bf16.msra.mxu0 0
  %451 = vmatprep.subr.bf16.mxu0 0
  %452 = vmatpush1.bf16.msra.mxu0 0
  %453 = vmatprep.subr.bf16.mxu0 0
  %454 = vmatpush1.bf16.msra.mxu0 0
  %455 = vmatprep.subr.bf16.mxu0 0
  %456 = vmatpush1.bf16.msra.mxu0 %v436
  %457 = vmatprep.subr.bf16.mxu0 0
  %458 = vmatpush2.bf16.msra.mxu0 0
  %459 = vmatprep.subr.bf16.mxu0 0
  %460 = vmatpush2.bf16.msra.mxu0 0
  %461 = vmatprep.subr.bf16.mxu0 0
  %462 = vmatpush2.bf16.msra.mxu0 0
  %463 = vmatprep.subr.bf16.mxu0 0
  %464 = vmatpush2.bf16.msra.mxu0 0
  %465 = vmatprep.subr.bf16.mxu0 0
  %466 = vmatpush2.bf16.msra.mxu0 0
  %467 = vmatprep.subr.bf16.mxu0 0
  %468 = vmatpush2.bf16.msra.mxu0 0
  %469 = vmatprep.subr.bf16.mxu0 0
  %470 = vmatpush2.bf16.msra.mxu0 0
  %471 = vmatprep.subr.bf16.mxu0 0
  %472 = vmatpush2.bf16.msra.mxu0 0
  %473 = vmatprep.mubr.bf16.mxu0 0
  %474 = vmatmul.mubr.bf16.gmra.mxu0 %v439
  %v475 = vpop.f32.mrf.mxu0
  %v476 = vadd.f32 0.0, %v475
  %v477 = vpop.f32.mrf.mxu0
  %v478 = vpop.f32.mrf.mxu0
  %v479 = vpop.f32.mrf.mxu0
  %480 = vdwg.mxu0
  %v483 = vunpack.c.l.s4 1966171168
  %v484 = vunpack.c.0.s8 %v483
  %v485 = vlaneseq
  %v486 = vshrl.u32 %v485, 7
  %v487 = vsub.s32 %v484, %v486
  %v488 = vrot.slane %v476, %v487
  %v489 = vcombine.high %v488, %v488
  %v491 = vunpack.c.l.s4 1966171168
  %v492 = vunpack.c.0.s8 %v491
  %v493 = vlaneseq
  %v494 = vshrl.u32 %v493, 7
  %v495 = vsub.s32 %v492, %v494
  %v496 = vrot.slane %v488, %v495
  %v498 = vunpack.c.l.s4 1966171168
  %v499 = vunpack.c.0.s8 %v498
  %v500 = vlaneseq
  %v501 = vshrl.u32 %v500, 7
  %v502 = vsub.s32 %v499, %v501
  %v503 = vrot.slane %v489, %v502
  %v504 = vlaneseq
  %v505 = vshrl.u32 %v504, 7
  %v506 = vsub.s32 0, %v505
  %v507 = vrot.slane %v496, %v506
  %v508 = vlaneseq
  %v509 = vshrl.u32 %v508, 7
  %v510 = vsub.s32 0, %v509
  %v511 = vrot.slane %v503, %v510
  %v514 = vld [vmem:[%s0 + $0x10] sm:$0xff]
  %v515 = vld [vmem:[%s0 + $0x18] sm:$0xff]
  %v516 = vld [vmem:[%s0 + $0x20] sm:$0xff]
  %v517 = vld [vmem:[%s0 + $0x28] sm:$0xff]
  %v518 = vpack.c.bf16 %v515, %v514
  %v519 = vpack.c.bf16 %v517, %v516
  %v520 = vld [vmem:[%s1 + $0x10] sm:$0xf]
  %v521 = vld [vmem:[%s1 + $0x18] sm:$0xf]
  %v524 = vunpack.c.l.b16 %v520
  %v525 = vunpack.c.l.b16 %v521
  %v526 = vpack.c.b16 %v525, %v524
  %v529 = vsel %vm30, %v518, 0
  %v532 = vsel %vm30, %v519, 0
  %534 = vmatprep.subr.bf16.mxu0 0
  %535 = vmatpush1.bf16.msra.mxu0 0
  %536 = vmatprep.subr.bf16.mxu0 0
  %537 = vmatpush1.bf16.msra.mxu0 0
  %538 = vmatprep.subr.bf16.mxu0 0
  %539 = vmatpush1.bf16.msra.mxu0 0
  %540 = vmatprep.subr.bf16.mxu0 0
  %541 = vmatpush1.bf16.msra.mxu0 0
  %542 = vmatprep.subr.bf16.mxu0 0
  %543 = vmatpush1.bf16.msra.mxu0 0
  %544 = vmatprep.subr.bf16.mxu0 0
  %545 = vmatpush1.bf16.msra.mxu0 0
  %546 = vmatprep.subr.bf16.mxu0 0
  %547 = vmatpush1.bf16.msra.mxu0 0
  %548 = vmatprep.subr.bf16.mxu0 0
  %549 = vmatpush1.bf16.msra.mxu0 %v526
  %550 = vmatprep.subr.bf16.mxu0 0
  %551 = vmatpush2.bf16.msra.mxu0 0
  %552 = vmatprep.subr.bf16.mxu0 0
  %553 = vmatpush2.bf16.msra.mxu0 0
  %554 = vmatprep.subr.bf16.mxu0 0
  %555 = vmatpush2.bf16.msra.mxu0 0
  %556 = vmatprep.subr.bf16.mxu0 0
  %557 = vmatpush2.bf16.msra.mxu0 0
  %558 = vmatprep.subr.bf16.mxu0 0
  %559 = vmatpush2.bf16.msra.mxu0 0
  %560 = vmatprep.subr.bf16.mxu0 0
  %561 = vmatpush2.bf16.msra.mxu0 0
  %562 = vmatprep.subr.bf16.mxu0 0
  %563 = vmatpush2.bf16.msra.mxu0 0
  %564 = vmatprep.subr.bf16.mxu0 0
  %565 = vmatpush2.bf16.msra.mxu0 0
  %566 = vmatprep.mubr.bf16.mxu0 0
  %567 = vmatmul.mubr.bf16.gmra.mxu0 %v529
  %v568 = vpop.f32.mrf.mxu0
  %v569 = vadd.f32 %v507, %v568
  %v570 = vpop.f32.mrf.mxu0
  %v571 = vpop.f32.mrf.mxu0
  %v572 = vadd.f32 %v507, %v571
  %v573 = vpop.f32.mrf.mxu0
  %574 = vmatprep.mubr.bf16.mxu0 0
  %575 = vmatmul.mubr.bf16.gmra.mxu0 %v532
  %v576 = vpop.f32.mrf.mxu0
  %v577 = vadd.f32 %v511, %v576
  %v578 = vpop.f32.mrf.mxu0
  %v579 = vpop.f32.mrf.mxu0
  %v580 = vadd.f32 %v511, %v579
  %v581 = vpop.f32.mrf.mxu0
  %582 = vdwg.mxu0
  %v583 = vld [vmem:[%s2 + $0x18] sm:$0x1]
  %v584 = vlaneseq
  %v585 = vshrl.u32 %v584, 7
  %v586 = vsub.s32 0, %v585
  %v587 = vrot.slane %v583, %v586
  %v588 = vadd.f32 %v569, %v587
  %v589 = vadd.f32 %v572, %v587
  %v590 = vadd.f32 %v577, %v587
  %v591 = vadd.f32 %v580, %v587
  %v592 = vmax.f32 %v588, 0.0
  %v593 = vmax.f32 %v589, 0.0
  %v594 = vmax.f32 %v590, 0.0
  %v595 = vmax.f32 %v591, 0.0
  %v596 = vpack.c.bf16 %v593, %v592
  %v597 = vpack.c.bf16 %v595, %v594
  %v598 = vld [vmem:[%s1 + $0x24] sm:$0xf]
  %v599 = vld [vmem:[%s1 + $0x2c] sm:$0xf]
  %v600 = vld [vmem:[%s1 + $0x34] sm:$0xf]
  %v601 = vld [vmem:[%s1 + $0x3c] sm:$0xf]
  %v602 = vld [vmem:[%s1 + $0x44] sm:$0xf]
  %v603 = vld [vmem:[%s1 + $0x4c] sm:$0xf]
  %v604 = vld [vmem:[%s1 + $0x54] sm:$0xf]
  %v605 = vld [vmem:[%s1 + $0x5c] sm:$0xf]
  %v606 = vld [vmem:[%s1 + $0x64] sm:$0xf]
  %v607 = vld [vmem:[%s1 + $0x6c] sm:$0xf]
  %v608 = vld [vmem:[%s1 + $0x74] sm:$0xf]
  %v609 = vld [vmem:[%s1 + $0x7c] sm:$0xf]
  %v610 = vld [vmem:[%s1 + $0x84] sm:$0xf]
  %v611 = vld [vmem:[%s1 + $0x8c] sm:$0xf]
  %v612 = vld [vmem:[%s1 + $0x94] sm:$0xf]
  %v613 = vld [vmem:[%s1 + $0x9c] sm:$0xf]
  %v614 = vld [vmem:[%s2 + $0x20] sm:$0x1]
  %v615 = vlaneseq
  %v616 = vshrl.u32 %v615, 7
  %v617 = vsub.s32 0, %v616
  %v618 = vrot.slane %v614, %v617
  %v635 = vunpack.c.l.b16 %v598
  %v636 = vunpack.c.l.b16 %v599
  %v637 = vunpack.c.l.b16 %v600
  %v638 = vunpack.c.l.b16 %v601
  %v639 = vunpack.c.l.b16 %v602
  %v640 = vunpack.c.l.b16 %v603
  %v641 = vunpack.c.l.b16 %v604
  %v642 = vunpack.c.l.b16 %v605
  %v643 = vunpack.c.l.b16 %v606
  %v644 = vunpack.c.l.b16 %v607
  %v645 = vunpack.c.l.b16 %v608
  %v646 = vunpack.c.l.b16 %v609
  %v647 = vunpack.c.l.b16 %v610
  %v648 = vunpack.c.l.b16 %v611
  %v649 = vunpack.c.l.b16 %v612
  %v650 = vunpack.c.l.b16 %v613
  %v651 = vpack.c.b16 %v636, %v635
  %v652 = vpack.c.b16 %v638, %v637
  %v653 = vpack.c.b16 %v640, %v639
  %v654 = vpack.c.b16 %v642, %v641
  %v655 = vpack.c.b16 %v644, %v643
  %v656 = vpack.c.b16 %v646, %v645
  %v657 = vpack.c.b16 %v648, %v647
  %v658 = vpack.c.b16 %v650, %v649
  %667 = vmatprep.subr.bf16.mxu0 0
  %668 = vmatpush1.bf16.msra.mxu0 %v658
  %669 = vmatprep.subr.bf16.mxu0 0
  %670 = vmatpush1.bf16.msra.mxu0 %v657
  %671 = vmatprep.subr.bf16.mxu0 0
  %672 = vmatpush1.bf16.msra.mxu0 %v656
  %673 = vmatprep.subr.bf16.mxu0 0
  %674 = vmatpush1.bf16.msra.mxu0 %v655
  %675 = vmatprep.subr.bf16.mxu0 0
  %676 = vmatpush1.bf16.msra.mxu0 %v654
  %677 = vmatprep.subr.bf16.mxu0 0
  %678 = vmatpush1.bf16.msra.mxu0 %v653
  %679 = vmatprep.subr.bf16.mxu0 0
  %680 = vmatpush1.bf16.msra.mxu0 %v652
  %681 = vmatprep.subr.bf16.mxu0 0
  %682 = vmatpush1.bf16.msra.mxu0 %v651
  %683 = vmatprep.subr.bf16.mxu0 0
  %684 = vmatpush2.bf16.msra.mxu0 0
  %685 = vmatprep.subr.bf16.mxu0 0
  %686 = vmatpush2.bf16.msra.mxu0 0
  %687 = vmatprep.subr.bf16.mxu0 0
  %688 = vmatpush2.bf16.msra.mxu0 0
  %689 = vmatprep.subr.bf16.mxu0 0
  %690 = vmatpush2.bf16.msra.mxu0 0
  %691 = vmatprep.subr.bf16.mxu0 0
  %692 = vmatpush2.bf16.msra.mxu0 0
  %693 = vmatprep.subr.bf16.mxu0 0
  %694 = vmatpush2.bf16.msra.mxu0 0
  %695 = vmatprep.subr.bf16.mxu0 0
  %696 = vmatpush2.bf16.msra.mxu0 0
  %697 = vmatprep.subr.bf16.mxu0 0
  %698 = vmatpush2.bf16.msra.mxu0 0
  %699 = vmatprep.mubr.bf16.mxu0 0
  %700 = vmatmul.mubr.bf16.gmra.mxu0 %v596
  %v701 = vpop.f32.mrf.mxu0
  %v702 = vadd.f32 %v618, %v701
  %v703 = vpop.f32.mrf.mxu0
  %v704 = vpop.f32.mrf.mxu0
  %v705 = vadd.f32 %v618, %v704
  %v706 = vpop.f32.mrf.mxu0
  %707 = vmatprep.mubr.bf16.mxu0 0
  %708 = vmatmul.mubr.bf16.gmra.mxu0 %v597
  %v709 = vpop.f32.mrf.mxu0
  %v710 = vadd.f32 %v618, %v709
  %v711 = vpop.f32.mrf.mxu0
  %v712 = vpop.f32.mrf.mxu0
  %v713 = vadd.f32 %v618, %v712
  %v714 = vpop.f32.mrf.mxu0
  %715 = vdwg.mxu0
  %v716 = vmax.f32 %v702, 0.0
  %v717 = vmax.f32 %v705, 0.0
  %v718 = vmax.f32 %v710, 0.0
  %v719 = vmax.f32 %v713, 0.0
  %v720 = vpack.c.bf16 %v717, %v716
  %v721 = vpack.c.bf16 %v719, %v718
  %v722 = vld [vmem:[%s1 + $0xa0] sm:$0xf]
  %v723 = vld [vmem:[%s1 + $0xa8] sm:$0xf]
  %v724 = vld [vmem:[%s1 + $0xb0] sm:$0xf]
  %v725 = vld [vmem:[%s1 + $0xb8] sm:$0xf]
  %v726 = vld [vmem:[%s1 + $0xc0] sm:$0xf]
  %v727 = vld [vmem:[%s1 + $0xc8] sm:$0xf]
  %v728 = vld [vmem:[%s1 + $0xd0] sm:$0xf]
  %v729 = vld [vmem:[%s1 + $0xd8] sm:$0xf]
  %v730 = vld [vmem:[%s1 + $0xe0] sm:$0xf]
  %v731 = vld [vmem:[%s1 + $0xe8] sm:$0xf]
  %v732 = vld [vmem:[%s1 + $0xf0] sm:$0xf]
  %v733 = vld [vmem:[%s1 + $0xf8] sm:$0xf]
  %v734 = vld [vmem:[%s1 + $0x100] sm:$0xf]
  %v735 = vld [vmem:[%s1 + $0x108] sm:$0xf]
  %v736 = vld [vmem:[%s1 + $0x110] sm:$0xf]
  %v737 = vld [vmem:[%s1 + $0x118] sm:$0xf]
  %v738 = vld [vmem:[%s2 + $0x28] sm:$0x1]
  %v739 = vlaneseq
  %v740 = vshrl.u32 %v739, 7
  %v741 = vsub.s32 0, %v740
  %v742 = vrot.slane %v738, %v741
  %v759 = vunpack.c.l.b16 %v722
  %v760 = vunpack.c.l.b16 %v723
  %v761 = vunpack.c.l.b16 %v724
  %v762 = vunpack.c.l.b16 %v725
  %v763 = vunpack.c.l.b16 %v726
  %v764 = vunpack.c.l.b16 %v727
  %v765 = vunpack.c.l.b16 %v728
  %v766 = vunpack.c.l.b16 %v729
  %v767 = vunpack.c.l.b16 %v730
  %v768 = vunpack.c.l.b16 %v731
  %v769 = vunpack.c.l.b16 %v732
  %v770 = vunpack.c.l.b16 %v733
  %v771 = vunpack.c.l.b16 %v734
  %v772 = vunpack.c.l.b16 %v735
  %v773 = vunpack.c.l.b16 %v736
  %v774 = vunpack.c.l.b16 %v737
  %v775 = vpack.c.b16 %v760, %v759
  %v776 = vpack.c.b16 %v762, %v761
  %v777 = vpack.c.b16 %v764, %v763
  %v778 = vpack.c.b16 %v766, %v765
  %v779 = vpack.c.b16 %v768, %v767
  %v780 = vpack.c.b16 %v770, %v769
  %v781 = vpack.c.b16 %v772, %v771
  %v782 = vpack.c.b16 %v774, %v773
  %791 = vmatprep.subr.bf16.mxu0 0
  %792 = vmatpush1.bf16.msra.mxu0 %v782
  %793 = vmatprep.subr.bf16.mxu0 0
  %794 = vmatpush1.bf16.msra.mxu0 %v781
  %795 = vmatprep.subr.bf16.mxu0 0
  %796 = vmatpush1.bf16.msra.mxu0 %v780
  %797 = vmatprep.subr.bf16.mxu0 0
  %798 = vmatpush1.bf16.msra.mxu0 %v779
  %799 = vmatprep.subr.bf16.mxu0 0
  %800 = vmatpush1.bf16.msra.mxu0 %v778
  %801 = vmatprep.subr.bf16.mxu0 0
  %802 = vmatpush1.bf16.msra.mxu0 %v777
  %803 = vmatprep.subr.bf16.mxu0 0
  %804 = vmatpush1.bf16.msra.mxu0 %v776
  %805 = vmatprep.subr.bf16.mxu0 0
  %806 = vmatpush1.bf16.msra.mxu0 %v775
  %807 = vmatprep.subr.bf16.mxu0 0
  %808 = vmatpush2.bf16.msra.mxu0 0
  %809 = vmatprep.subr.bf16.mxu0 0
  %810 = vmatpush2.bf16.msra.mxu0 0
  %811 = vmatprep.subr.bf16.mxu0 0
  %812 = vmatpush2.bf16.msra.mxu0 0
  %813 = vmatprep.subr.bf16.mxu0 0
  %814 = vmatpush2.bf16.msra.mxu0 0
  %815 = vmatprep.subr.bf16.mxu0 0
  %816 = vmatpush2.bf16.msra.mxu0 0
  %817 = vmatprep.subr.bf16.mxu0 0
  %818 = vmatpush2.bf16.msra.mxu0 0
  %819 = vmatprep.subr.bf16.mxu0 0
  %820 = vmatpush2.bf16.msra.mxu0 0
  %821 = vmatprep.subr.bf16.mxu0 0
  %822 = vmatpush2.bf16.msra.mxu0 0
  %823 = vmatprep.mubr.bf16.mxu0 0
  %824 = vmatmul.mubr.bf16.gmra.mxu0 %v720
  %v825 = vpop.f32.mrf.mxu0
  %v826 = vadd.f32 %v742, %v825
  %v827 = vpop.f32.mrf.mxu0
  %v828 = vpop.f32.mrf.mxu0
  %v829 = vadd.f32 %v742, %v828
  %v830 = vpop.f32.mrf.mxu0
  %831 = vmatprep.mubr.bf16.mxu0 0
  %832 = vmatmul.mubr.bf16.gmra.mxu0 %v721
  %v833 = vpop.f32.mrf.mxu0
  %v834 = vadd.f32 %v742, %v833
  %v835 = vpop.f32.mrf.mxu0
  %v836 = vpop.f32.mrf.mxu0
  %v837 = vadd.f32 %v742, %v836
  %v838 = vpop.f32.mrf.mxu0
  %839 = vdwg.mxu0
  %v840 = vmax.f32 %v826, 0.0
  %v841 = vmax.f32 %v829, 0.0
  %v842 = vmax.f32 %v834, 0.0
  %v843 = vmax.f32 %v837, 0.0
  %v844 = vpack.c.bf16 %v841, %v840
  %v845 = vpack.c.bf16 %v843, %v842
  %v846 = vld [vmem:[%s1 + $0x120] sm:$0xf]
  %v847 = vld [vmem:[%s1 + $0x128] sm:$0xf]
  %v848 = vld [vmem:[%s1 + $0x130] sm:$0xf]
  %v849 = vld [vmem:[%s1 + $0x138] sm:$0xf]
  %v850 = vld [vmem:[%s1 + $0x140] sm:$0xf]
  %v851 = vld [vmem:[%s1 + $0x148] sm:$0xf]
  %v852 = vld [vmem:[%s1 + $0x150] sm:$0xf]
  %v853 = vld [vmem:[%s1 + $0x158] sm:$0xf]
  %v854 = vld [vmem:[%s1 + $0x160] sm:$0xf]
  %v855 = vld [vmem:[%s1 + $0x168] sm:$0xf]
  %v856 = vld [vmem:[%s1 + $0x170] sm:$0xf]
  %v857 = vld [vmem:[%s1 + $0x178] sm:$0xf]
  %v858 = vld [vmem:[%s1 + $0x180] sm:$0xf]
  %v859 = vld [vmem:[%s1 + $0x188] sm:$0xf]
  %v860 = vld [vmem:[%s1 + $0x190] sm:$0xf]
  %v861 = vld [vmem:[%s1 + $0x198] sm:$0xf]
  %v862 = vld [vmem:[%s2 + $0x30] sm:$0x1]
  %v863 = vlaneseq
  %v864 = vshrl.u32 %v863, 7
  %v865 = vsub.s32 0, %v864
  %v866 = vrot.slane %v862, %v865
  %v883 = vunpack.c.l.b16 %v846
  %v884 = vunpack.c.l.b16 %v847
  %v885 = vunpack.c.l.b16 %v848
  %v886 = vunpack.c.l.b16 %v849
  %v887 = vunpack.c.l.b16 %v850
  %v888 = vunpack.c.l.b16 %v851
  %v889 = vunpack.c.l.b16 %v852
  %v890 = vunpack.c.l.b16 %v853
  %v891 = vunpack.c.l.b16 %v854
  %v892 = vunpack.c.l.b16 %v855
  %v893 = vunpack.c.l.b16 %v856
  %v894 = vunpack.c.l.b16 %v857
  %v895 = vunpack.c.l.b16 %v858
  %v896 = vunpack.c.l.b16 %v859
  %v897 = vunpack.c.l.b16 %v860
  %v898 = vunpack.c.l.b16 %v861
  %v899 = vpack.c.b16 %v884, %v883
  %v900 = vpack.c.b16 %v886, %v885
  %v901 = vpack.c.b16 %v888, %v887
  %v902 = vpack.c.b16 %v890, %v889
  %v903 = vpack.c.b16 %v892, %v891
  %v904 = vpack.c.b16 %v894, %v893
  %v905 = vpack.c.b16 %v896, %v895
  %v906 = vpack.c.b16 %v898, %v897
  %915 = vmatprep.subr.bf16.mxu0 0
  %916 = vmatpush1.bf16.msra.mxu0 %v906
  %917 = vmatprep.subr.bf16.mxu0 0
  %918 = vmatpush1.bf16.msra.mxu0 %v905
  %919 = vmatprep.subr.bf16.mxu0 0
  %920 = vmatpush1.bf16.msra.mxu0 %v904
  %921 = vmatprep.subr.bf16.mxu0 0
  %922 = vmatpush1.bf16.msra.mxu0 %v903
  %923 = vmatprep.subr.bf16.mxu0 0
  %924 = vmatpush1.bf16.msra.mxu0 %v902
  %925 = vmatprep.subr.bf16.mxu0 0
  %926 = vmatpush1.bf16.msra.mxu0 %v901
  %927 = vmatprep.subr.bf16.mxu0 0
  %928 = vmatpush1.bf16.msra.mxu0 %v900
  %929 = vmatprep.subr.bf16.mxu0 0
  %930 = vmatpush1.bf16.msra.mxu0 %v899
  %931 = vmatprep.subr.bf16.mxu0 0
  %932 = vmatpush2.bf16.msra.mxu0 0
  %933 = vmatprep.subr.bf16.mxu0 0
  %934 = vmatpush2.bf16.msra.mxu0 0
  %935 = vmatprep.subr.bf16.mxu0 0
  %936 = vmatpush2.bf16.msra.mxu0 0
  %937 = vmatprep.subr.bf16.mxu0 0
  %938 = vmatpush2.bf16.msra.mxu0 0
  %939 = vmatprep.subr.bf16.mxu0 0
  %940 = vmatpush2.bf16.msra.mxu0 0
  %941 = vmatprep.subr.bf16.mxu0 0
  %942 = vmatpush2.bf16.msra.mxu0 0
  %943 = vmatprep.subr.bf16.mxu0 0
  %944 = vmatpush2.bf16.msra.mxu0 0
  %945 = vmatprep.subr.bf16.mxu0 0
  %946 = vmatpush2.bf16.msra.mxu0 0
  %947 = vmatprep.mubr.bf16.mxu0 0
  %948 = vmatmul.mubr.bf16.gmra.mxu0 %v844
  %v949 = vpop.f32.mrf.mxu0
  %v950 = vadd.f32 %v866, %v949
  %v951 = vpop.f32.mrf.mxu0
  %v952 = vpop.f32.mrf.mxu0
  %v953 = vadd.f32 %v866, %v952
  %v954 = vpop.f32.mrf.mxu0
  %955 = vmatprep.mubr.bf16.mxu0 0
  %956 = vmatmul.mubr.bf16.gmra.mxu0 %v845
  %v957 = vpop.f32.mrf.mxu0
  %v958 = vadd.f32 %v866, %v957
  %v959 = vpop.f32.mrf.mxu0
  %v960 = vpop.f32.mrf.mxu0
  %v961 = vadd.f32 %v866, %v960
  %v962 = vpop.f32.mrf.mxu0
  %963 = vdwg.mxu0
  %v964 = vlaneseq
  %v965 = vand.u32 %v964, 127
  %v966 = vmax.f32 %v950, -5.0
  %v967 = vmax.f32 %v953, -5.0
  %v968 = vmax.f32 %v958, -5.0
  %v969 = vmax.f32 %v961, -5.0
  %v970 = vmin.f32 %v966, 5.0
  %v971 = vmin.f32 %v967, 5.0
  %v972 = vmin.f32 %v968, 5.0
  %v973 = vmin.f32 %v969, 5.0
  %v974 = vmax.f32 %v950, 0.0
  %v975 = vmax.f32 %v953, 0.0
  %v976 = vmax.f32 %v958, 0.0
  %v977 = vmax.f32 %v961, 0.0
  %v978 = vand.u32 2147483647, %v950
  %v979 = vand.u32 2147483647, %v953
  %v980 = vand.u32 2147483647, %v958
  %v981 = vand.u32 2147483647, %v961
  %v982 = vsub.f32 0.0, %v978
  %v983 = vsub.f32 0.0, %v979
  %v984 = vsub.f32 0.0, %v980
  %v985 = vsub.f32 0.0, %v981
  %v986 = vmul.f32 %v982, 1.442695
  %v987 = vpow.pop %v986
  %v988 = vmul.f32 %v983, 1.442695
  %v989 = vpow.pop %v988
  %v990 = vmul.f32 %v984, 1.442695
  %v991 = vpow.pop %v990
  %v992 = vmul.f32 %v985, 1.442695
  %v993 = vpow.pop %v992
  %v994 = vadd.f32 %v987, 1.0
  %v995 = vlog2.pop %v994
  %v996 = vmul.f32 %v995, 0.6931472
  %v997 = vmul.f32 -0.5, %v987
  %v998 = vadd.f32 %v997, 1.0
  %v999 = vmul.f32 %v998, %v987
  %v1000 = vand.u32 2147483647, %v987
  %vm1001 = vcmp.lt.f32.partialorder %v1000, 0.0004427343
  %v1002 = vsel %vm1001, %v999, %v996
  %v1003 = vadd.f32 %v989, 1.0
  %v1004 = vlog2.pop %v1003
  %v1005 = vmul.f32 %v1004, 0.6931472
  %v1006 = vmul.f32 -0.5, %v989
  %v1007 = vadd.f32 %v1006, 1.0
  %v1008 = vmul.f32 %v1007, %v989
  %v1009 = vand.u32 2147483647, %v989
  %vm1010 = vcmp.lt.f32.partialorder %v1009, 0.0004427343
  %v1011 = vsel %vm1010, %v1008, %v1005
  %v1012 = vadd.f32 %v991, 1.0
  %v1013 = vlog2.pop %v1012
  %v1014 = vmul.f32 %v1013, 0.6931472
  %v1015 = vmul.f32 -0.5, %v991
  %v1016 = vadd.f32 %v1015, 1.0
  %v1017 = vmul.f32 %v1016, %v991
  %v1018 = vand.u32 2147483647, %v991
  %vm1019 = vcmp.lt.f32.partialorder %v1018, 0.0004427343
  %v1020 = vsel %vm1019, %v1017, %v1014
  %v1021 = vadd.f32 %v993, 1.0
  %v1022 = vlog2.pop %v1021
  %v1023 = vmul.f32 %v1022, 0.6931472
  %v1024 = vmul.f32 -0.5, %v993
  %v1025 = vadd.f32 %v1024, 1.0
  %v1026 = vmul.f32 %v1025, %v993
  %v1027 = vand.u32 2147483647, %v993
  %vm1028 = vcmp.lt.f32.partialorder %v1027, 0.0004427343
  %v1029 = vsel %vm1028, %v1026, %v1023
  %v1030 = vadd.f32 %v974, %v1002
  %v1031 = vadd.f32 %v975, %v1011
  %v1032 = vadd.f32 %v976, %v1020
  %v1033 = vadd.f32 %v977, %v1029
  %v1034 = vmul.f32 %v1030, 0.9
  %v1035 = vmul.f32 %v1031, 0.9
  %v1036 = vmul.f32 %v1032, 0.9
  %v1037 = vmul.f32 %v1033, 0.9
  %v1038 = vadd.f32 %v1034, 0.1
  %v1039 = vadd.f32 %v1035, 0.1
  %v1040 = vadd.f32 %v1036, 0.1
  %v1041 = vadd.f32 %v1037, 0.1
  %vm1042 = vcmp.lt.s32.totalorder %v965, 1
  %v1043 = vsel %vm1042, %v970, %v1038
  %v1044 = vsel %vm1042, %v971, %v1039
  %v1045 = vsel %vm1042, %v972, %v1040
  %v1046 = vsel %vm1042, %v973, %v1041
  %1047 = vst [vmem:[%s3] sm:$0xff] %v1043
  %1048 = vst [vmem:[%s3 + $0x8] sm:$0xff] %v1044
  %1049 = vst [vmem:[%s3 + $0x10] sm:$0xff] %v1045
  %1050 = vst [vmem:[%s3 + $0x18] sm:$0xff] %v1046
  %1053 = vrot.lane.b32.xlu0 %v142, 5
  %v1054 = vpop.permute.xlu0 %1053
  %1057 = vrot.lane.b32.xlu0 %v171, 6
  %v1058 = vpop.permute.xlu0 %1057
  %v1060 = vsel %vm102, %v421, %v1054
  %v1061 = vsel %vm427, %v1060, %v1058
  %vm1062 = vcmask 56320
  %v1063 = vsel %vm1062, %v1061, 0.0
  %1064 = vst [vmem:[%s3 + $0x20] sm:$0x3] %v1063
  // Predicated region
  $region14: #{neural_process_forward.1} parent=0 // pred_check
    _
  $region15: #{neural_process_forward.1} parent=0 // pred_check_branch
    %1066 = sbr.rel (0) target = $region17
  $region16: #{neural_process_forward.1} parent=0 // pred_region
    _
  $region17: #{neural_process_forward.1} parent=0 // pred_fallthru
    _
  // Predicated region
  $region18: #{neural_process_forward.1} parent=0 // pred_check
    _
  $region19: #{neural_process_forward.1} parent=0 // pred_check_branch
    %1068 = sbr.rel (0) target = $region21
  $region20: #{neural_process_forward.1} parent=0 // pred_region
    _
  $region21: #{neural_process_forward.1} parent=0 // pred_fallthru
    _

</llo_original>
